<compile_context>
chip_gen: v6e
topology: v6e:2x2x1
jax: 0.10.0
libtpu: 0.0.40
codegen_flags: <defaults>
</compile_context>

<pallas_src>
import functools

import jax
import jax.numpy as jnp
from jax.experimental import pallas as pl
from jax.experimental.pallas import tpu as pltpu

_NEG_BIG = -1e30  # effectively -inf for padded vocab columns (exp underflows to 0)


def _round_up(x, m):
    return ((x + m - 1) // m) * m


def _cdiv(a, b):
    return -(-a // b)


# ----------------------------------------------------------------------------
# Pass 1: raw logits tiles + online logsumexp (streamed vocab axis).
# ----------------------------------------------------------------------------
def _logits_lse_kernel(x_ref, w_ref, b_ref, logits_ref, lse_ref, m_sc, l_sc, *, tv):
    """Grid = (M tiles [parallel], V tiles [arbitrary, streamed])."""
    j = pl.program_id(1)
    nv = pl.num_programs(1)

    @pl.when(j == 0)
    def _():
        m_sc[...] = jnp.full_like(m_sc, -jnp.inf)
        l_sc[...] = jnp.zeros_like(l_sc)

    # (tm, K) @ (K, tv) on the MXU with f32 accumulation.
    logits = jnp.dot(x_ref[...], w_ref[...], preferred_element_type=jnp.float32)

    # Bias is VMEM-resident: slice the current 128-aligned vocab window.
    col = pl.multiple_of(j * tv, 128)
    logits = logits + b_ref[:, pl.ds(col, tv)]            # (tm, tv) + (1, tv)

    # Online logsumexp across streamed vocab tiles.
    m_new = jnp.maximum(m_sc[...], jnp.max(logits, axis=-1, keepdims=True))
    l_sc[...] = (l_sc[...] * jnp.exp(m_sc[...] - m_new)
                 + jnp.sum(jnp.exp(logits - m_new), axis=-1, keepdims=True))
    m_sc[...] = m_new

    # Per-(i, j) lane-dense output tile of raw logits (no resident full-vocab row).
    logits_ref[...] = logits.astype(logits_ref.dtype)

    @pl.when(j == nv - 1)
    def _():
        lse_ref[...] = m_sc[...] + jnp.log(l_sc[...])     # (tm, 1), f32


# ----------------------------------------------------------------------------
# Pass 2: tiled elementwise normalize (logits - lse), f32 math.
# ----------------------------------------------------------------------------
def _normalize_kernel(logits_ref, lse_ref, o_ref):
    o_ref[...] = (logits_ref[...].astype(jnp.float32) - lse_ref[...]).astype(o_ref.dtype)


# ----------------------------------------------------------------------------
# Parameter preparation (do ONCE at init, not per call).
# ----------------------------------------------------------------------------
def prepare_decoder_final_params(weight, bias, *, compute_dtype=jnp.bfloat16, tv=512):
    """Cast + vocab-pad the projection parameters once.

    weight: (token, vocab), bias: (vocab,).
    Returns a dict reusable across calls (avoids a full weight copy per step).
    """
    token, vocab = weight.shape
    v128 = _round_up(vocab, 128)
    tv_eff = min(_round_up(tv, 128), v128)
    v_pad = _round_up(v128, tv_eff)

    w = weight.astype(compute_dtype)
    b = bias.astype(jnp.float32).reshape(1, vocab)
    if v_pad != vocab:
        w = jnp.pad(w, ((0, 0), (0, v_pad - vocab)))
        b = jnp.pad(b, ((0, 0), (0, v_pad - vocab)), constant_values=_NEG_BIG)
    return {"w": w, "b": b, "vocab": vocab, "tv": tv_eff}


def _pick_vmem_limit(tm, tv, token, v_pad, compute_dtype, logits_dtype, w_bufs):
    """Explicit scoped-VMEM limit: tile budget with headroom, capped below the chip's VMEM."""
    cb = jnp.dtype(compute_dtype).itemsize
    lb = jnp.dtype(logits_dtype).itemsize
    est = (2 * tm * max(token, 128) * cb                 # x tile (double-buffered)
           + max(w_bufs, 2) * max(token, 8) * tv * cb    # streamed weight columns
           + 2 * 8 * v_pad * 4                           # resident bias (sublane-padded)
           + 2 * tm * tv * lb                            # logits output tile
           + 2 * tm * 128 * 4                            # lse output (lane-padded)
           + 2 * tm * 128 * 4)                           # m/l scratch (lane-padded)
    try:
        cap = pltpu.get_tpu_info().vmem_capacity_bytes   # 128 MiB v5e/v6e, 64 MiB v7x
    except Exception:
        cap = 64 << 20
    limit = max(4 * est, 32 << 20)
    limit = min(limit, max(cap - (8 << 20), 32 << 20))
    return int(limit)


# ----------------------------------------------------------------------------
# Wrapper: forward pass of DecoderFinalLayer.
# ----------------------------------------------------------------------------
def decoder_final_layer(x, weight=None, bias=None, *, tm=512, tv=512,
                        compute_dtype=jnp.bfloat16, out_dtype=None,
                        logits_dtype=jnp.float32, weight_buffers=2,
                        params=None):
    """x: (batch, seq, token); weight: (token, vocab); bias: (vocab,).

    Pass `params=prepare_decoder_final_params(weight, bias, ...)` to avoid the
    per-call cast/pad of the full weight matrix.
    """
    batch, seq, token = x.shape
    if params is None:
        params = prepare_decoder_final_params(
            weight, bias, compute_dtype=compute_dtype, tv=tv)
    w, b, vocab, tv_eff = params["w"], params["b"], params["vocab"], params["tv"]
    assert w.shape[0] == token, "weight/token mismatch"
    v_pad = w.shape[1]
    out_dtype = out_dtype or x.dtype

    # Row tiling: multiple of 8 sublanes, rebalanced so v7x's 2 TensorCores both
    # get at least one row tile whenever there are >= 16 rows.
    M = batch * seq
    m8 = _round_up(M, 8)
    tm_eff = min(_round_up(tm, 8), m8)
    grid_m = _cdiv(m8, tm_eff)
    if grid_m == 1 and m8 >= 16:
        grid_m = 2
    tm_eff = _round_up(_cdiv(m8, grid_m), 8)
    m_pad = tm_eff * grid_m
    grid_v = v_pad // tv_eff

    x2d = x.reshape(M, token).astype(w.dtype)
    if m_pad != M:
        x2d = jnp.pad(x2d, ((0, m_pad - M), (0, 0)))

    vmem_limit = _pick_vmem_limit(tm_eff, tv_eff, token, v_pad,
                                  w.dtype, logits_dtype, weight_buffers)

    # ---- Pass 1: raw logits tiles + lse -------------------------------------
    w_spec_kwargs = {}
    if weight_buffers and weight_buffers > 2:
        # Deepen the weight stream only if the weight DMA is still exposed.
        w_spec_kwargs["pipeline_mode"] = pl.Buffered(weight_buffers)

    logits, lse = pl.pallas_call(
        functools.partial(_logits_lse_kernel, tv=tv_eff),
        out_shape=(jax.ShapeDtypeStruct((m_pad, v_pad), logits_dtype),
                   jax.ShapeDtypeStruct((m_pad, 1), jnp.float32)),
        grid_spec=pltpu.PrefetchScalarGridSpec(
            num_scalar_prefetch=0,
            grid=(grid_m, grid_v),
            in_specs=[
                pl.BlockSpec((tm_eff, token), lambda i, j: (i, 0)),   # x row tile
                pl.BlockSpec((token, tv_eff), lambda i, j: (0, j),    # streamed weight cols
                             **w_spec_kwargs),
                pl.BlockSpec((1, v_pad), lambda i, j: (0, 0)),        # resident bias
            ],
            out_specs=[
                pl.BlockSpec((tm_eff, tv_eff), lambda i, j: (i, j)),  # raw logits tile
                pl.BlockSpec((tm_eff, 1), lambda i, j: (i, 0)),       # lse (tiny, resident)
            ],
            scratch_shapes=[
                pltpu.VMEM((tm_eff, 1), jnp.float32),   # running max
                pltpu.VMEM((tm_eff, 1), jnp.float32),   # running sum(exp)
            ],
        ),
        compiler_params=pltpu.CompilerParams(
            dimension_semantics=("parallel", "arbitrary"),
            vmem_limit_bytes=vmem_limit),
    )(x2d, w, b)

    # ---- Pass 2: normalize (logits - lse), f32 math, lane-dense stores ------
    out = pl.pallas_call(
        _normalize_kernel,
        out_shape=jax.ShapeDtypeStruct((m_pad, v_pad), out_dtype),
        grid_spec=pltpu.PrefetchScalarGridSpec(
            num_scalar_prefetch=0,
            grid=(grid_m, grid_v),
            in_specs=[
                pl.BlockSpec((tm_eff, tv_eff), lambda i, j: (i, j)),
                pl.BlockSpec((tm_eff, 1), lambda i, j: (i, 0)),
            ],
            out_specs=pl.BlockSpec((tm_eff, tv_eff), lambda i, j: (i, j)),
        ),
        compiler_params=pltpu.CompilerParams(
            dimension_semantics=("parallel", "parallel"),
            vmem_limit_bytes=vmem_limit),
    )(logits, lse)

    return out[:M, :vocab].reshape(batch, seq, vocab)


def reference(x, weight, bias):
    logits = jnp.einsum("bsk,kv->bsv", x, weight) + bias
    return jax.nn.log_softmax(logits, axis=-1)


if __name__ == "__main__":
    # Small shapes implied by the module: dim.token = 32, dim.vocab = 64.
    batch, seq, token, vocab = 2, 8, 32, 64

    key = jax.random.PRNGKey(0)
    kx, kw, kb = jax.random.split(key, 3)

    # Deterministic parameter init (PyTorch Linear-style uniform bound).
    bound = 1.0 / (token ** 0.5)
    weight = jax.random.uniform(kw, (token, vocab), jnp.float32, -bound, bound)
    bias = jax.random.uniform(kb, (vocab,), jnp.float32, -bound, bound)
    x = jax.random.normal(kx, (batch, seq, token), jnp.float32)

    ref = reference(x, weight, bias)

    # Exact f32 path (tight correctness check).
    out_f32 = decoder_final_layer(x, weight, bias, compute_dtype=jnp.float32)
    jax.block_until_ready(out_f32)
    assert out_f32.shape == (batch, seq, vocab)
    assert jnp.allclose(out_f32, ref, atol=1e-5, rtol=1e-5), "f32 mismatch vs reference"

    # Default fast path: bf16 matmul inputs, params cast/padded ONCE ("at init").
    params = prepare_decoder_final_params(weight, bias)          # bf16, vocab-padded
    out_bf16 = decoder_final_layer(x, params=params)
    jax.block_until_ready(out_bf16)
    assert out_bf16.shape == (batch, seq, vocab)
    assert jnp.allclose(out_bf16.astype(jnp.float32), ref, atol=1e-1, rtol=1e-1), \
        "bf16 mismatch vs reference"

    print("KERNEL_OK")
</pallas_src>

<mosaic_0001>
module attributes {stable_mosaic.version = 11 : i64} {
  func.func @_logits_lse_kernel(%arg0: i32, %arg1: i32, %arg2: memref<8x32xf32, #tpu.memory_space<vmem>>, %arg3: memref<32x128xf32, #tpu.memory_space<vmem>>, %arg4: memref<1x128xf32, #tpu.memory_space<vmem>>, %arg5: memref<8x128xf32, #tpu.memory_space<vmem>>, %arg6: memref<8x1xf32, #tpu.memory_space<vmem>>, %arg7: memref<8x1xf32, #tpu.memory_space<vmem>>, %arg8: memref<8x1xf32, #tpu.memory_space<vmem>>) attributes {dimension_semantics = [#tpu.dimension_semantics<parallel>, #tpu.dimension_semantics<arbitrary>], iteration_bounds = array<i64: 2, 1>, scalar_prefetch = 0 : i64, scratch_operands = 2 : i64, tpu.core_type = #tpu.core_type<tc>, window_params = [{transform_indices = @transform_0, window_bounds = array<i64: 8, 32>}, {transform_indices = @transform_1, window_bounds = array<i64: 32, 128>}, {pipeline_mode = #tpu.pipeline_mode<synchronous>, transform_indices = @transform_2, window_bounds = array<i64: 1, 128>}, {transform_indices = @transform_3, window_bounds = array<i64: 8, 128>}, {transform_indices = @transform_4, window_bounds = array<i64: 8, 1>}]} {
    %c0_i32 = arith.constant 0 : i32
    %0 = arith.cmpi eq, %arg1, %c0_i32 : i32
    %1 = arith.extui %0 : i1 to i32
    %c0_i32_0 = arith.constant 0 : i32
    %2 = arith.cmpi ne, %1, %c0_i32_0 : i32
    scf.if %2 {
      %cst_21 = arith.constant 0xFF800000 : f32
      %33 = vector.broadcast %cst_21 : f32 to vector<8x1xf32>
      %c0_22 = arith.constant 0 : index
      %c0_23 = arith.constant 0 : index
      %34 = vector.load %arg7[%c0_22, %c0_23] : memref<8x1xf32, #tpu.memory_space<vmem>>, vector<8x1xf32>
      tpu.vector_store %arg7[%c0_22, %c0_23], %33 {strides = array<i32>} : memref<8x1xf32, #tpu.memory_space<vmem>>, vector<8x1xf32>,
      %cst_24 = arith.constant 0.000000e+00 : f32
      %35 = vector.broadcast %cst_24 : f32 to vector<8x1xf32>
      %c0_25 = arith.constant 0 : index
      %c0_26 = arith.constant 0 : index
      %36 = vector.load %arg8[%c0_25, %c0_26] : memref<8x1xf32, #tpu.memory_space<vmem>>, vector<8x1xf32>
      tpu.vector_store %arg8[%c0_25, %c0_26], %35 {strides = array<i32>} : memref<8x1xf32, #tpu.memory_space<vmem>>, vector<8x1xf32>,
    } else {
    }
    %c0 = arith.constant 0 : index
    %c0_1 = arith.constant 0 : index
    %3 = vector.load %arg2[%c0, %c0_1] : memref<8x32xf32, #tpu.memory_space<vmem>>, vector<8x32xf32>
    %c0_2 = arith.constant 0 : index
    %c0_3 = arith.constant 0 : index
    %4 = vector.load %arg3[%c0_2, %c0_3] : memref<32x128xf32, #tpu.memory_space<vmem>>, vector<32x128xf32>
    %cst = arith.constant dense<0.000000e+00> : vector<8x128xf32>
    %5 = tpu.matmul %3, %4, %cst {dimension_numbers = #tpu.dot_dimension_numbers<[1], [0], [0], [1], [0, 0, 1, 1], [], []>} : vector<8x32xf32>, vector<32x128xf32>, vector<8x128xf32> -> vector<8x128xf32>
    %c128_i32 = arith.constant 128 : i32
    %6 = arith.muli %arg1, %c128_i32 : i32
    %7 = tpu.assume_multiple %6, 128 : i32
    %c0_4 = arith.constant 0 : index
    %8 = arith.index_cast %7 : i32 to index
    %9 = vector.load %arg4[%c0_4, %8] : memref<1x128xf32, #tpu.memory_space<vmem>>, vector<1x128xf32>
    %10 = vector.broadcast %9 : vector<1x128xf32> to vector<8x128xf32>
    %11 = arith.addf %5, %10 : vector<8x128xf32>
    %c0_5 = arith.constant 0 : index
    %c0_6 = arith.constant 0 : index
    %12 = vector.load %arg7[%c0_5, %c0_6] : memref<8x1xf32, #tpu.memory_space<vmem>>, vector<8x1xf32>
    %cst_7 = arith.constant dense<0xFF800000> : vector<8xf32>
    %13 = vector.multi_reduction <maximumf>, %11, %cst_7 [1] : vector<8x128xf32> to vector<8xf32>
    %14 = vector.shape_cast %13 : vector<8xf32> to vector<8x1xf32>
    %15 = arith.maximumf %12, %14 : vector<8x1xf32>
    %c0_8 = arith.constant 0 : index
    %c0_9 = arith.constant 0 : index
    %16 = vector.load %arg8[%c0_8, %c0_9] : memref<8x1xf32, #tpu.memory_space<vmem>>, vector<8x1xf32>
    %c0_10 = arith.constant 0 : index
    %c0_11 = arith.constant 0 : index
    %17 = vector.load %arg7[%c0_10, %c0_11] : memref<8x1xf32, #tpu.memory_space<vmem>>, vector<8x1xf32>
    %18 = arith.subf %17, %15 : vector<8x1xf32>
    %19 = math.exp %18 : vector<8x1xf32>
    %20 = arith.mulf %16, %19 : vector<8x1xf32>
    %21 = vector.broadcast %15 : vector<8x1xf32> to vector<8x128xf32>
    %22 = arith.subf %11, %21 : vector<8x128xf32>
    %23 = math.exp %22 : vector<8x128xf32>
    %cst_12 = arith.constant dense<0.000000e+00> : vector<8xf32>
    %24 = vector.multi_reduction <add>, %23, %cst_12 [1] : vector<8x128xf32> to vector<8xf32>
    %25 = vector.shape_cast %24 : vector<8xf32> to vector<8x1xf32>
    %26 = arith.addf %20, %25 : vector<8x1xf32>
    %c0_13 = arith.constant 0 : index
    %c0_14 = arith.constant 0 : index
    %27 = vector.load %arg8[%c0_13, %c0_14] : memref<8x1xf32, #tpu.memory_space<vmem>>, vector<8x1xf32>
    tpu.vector_store %arg8[%c0_13, %c0_14], %26 {strides = array<i32>} : memref<8x1xf32, #tpu.memory_space<vmem>>, vector<8x1xf32>,
    %c0_15 = arith.constant 0 : index
    %c0_16 = arith.constant 0 : index
    %28 = vector.load %arg7[%c0_15, %c0_16] : memref<8x1xf32, #tpu.memory_space<vmem>>, vector<8x1xf32>
    tpu.vector_store %arg7[%c0_15, %c0_16], %15 {strides = array<i32>} : memref<8x1xf32, #tpu.memory_space<vmem>>, vector<8x1xf32>,
    %c0_17 = arith.constant 0 : index
    %c0_18 = arith.constant 0 : index
    %29 = vector.load %arg5[%c0_17, %c0_18] : memref<8x128xf32, #tpu.memory_space<vmem>>, vector<8x128xf32>
    tpu.vector_store %arg5[%c0_17, %c0_18], %11 {strides = array<i32>} : memref<8x128xf32, #tpu.memory_space<vmem>>, vector<8x128xf32>,
    %c0_i32_19 = arith.constant 0 : i32
    %30 = arith.cmpi eq, %arg1, %c0_i32_19 : i32
    %31 = arith.extui %30 : i1 to i32
    %c0_i32_20 = arith.constant 0 : i32
    %32 = arith.cmpi ne, %31, %c0_i32_20 : i32
    scf.if %32 {
      %c0_21 = arith.constant 0 : index
      %c0_22 = arith.constant 0 : index
      %33 = vector.load %arg7[%c0_21, %c0_22] : memref<8x1xf32, #tpu.memory_space<vmem>>, vector<8x1xf32>
      %c0_23 = arith.constant 0 : index
      %c0_24 = arith.constant 0 : index
      %34 = vector.load %arg8[%c0_23, %c0_24] : memref<8x1xf32, #tpu.memory_space<vmem>>, vector<8x1xf32>
      %35 = math.log %34 : vector<8x1xf32>
      %36 = arith.addf %33, %35 : vector<8x1xf32>
      %c0_25 = arith.constant 0 : index
      %c0_26 = arith.constant 0 : index
      %37 = vector.load %arg6[%c0_25, %c0_26] : memref<8x1xf32, #tpu.memory_space<vmem>>, vector<8x1xf32>
      tpu.vector_store %arg6[%c0_25, %c0_26], %36 {strides = array<i32>} : memref<8x1xf32, #tpu.memory_space<vmem>>, vector<8x1xf32>,
    } else {
    }
    return
  }
  func.func @transform_0(%arg0: i32, %arg1: i32) -> (i32, i32) {
    %c0_i32 = arith.constant 0 : i32
    %c0_i32_0 = arith.constant 0 : i32
    return %arg0, %c0_i32 : i32, i32
  }
  func.func @transform_1(%arg0: i32, %arg1: i32) -> (i32, i32) {
    %c0_i32 = arith.constant 0 : i32
    %c0_i32_0 = arith.constant 0 : i32
    return %c0_i32, %arg1 : i32, i32
  }
  func.func @transform_2(%arg0: i32, %arg1: i32) -> (i32, i32) {
    %c0_i32 = arith.constant 0 : i32
    %c0_i32_0 = arith.constant 0 : i32
    %c0_i32_1 = arith.constant 0 : i32
    return %c0_i32, %c0_i32_0 : i32, i32
  }
  func.func @transform_3(%arg0: i32, %arg1: i32) -> (i32, i32) {
    %c0_i32 = arith.constant 0 : i32
    return %arg0, %arg1 : i32, i32
  }
  func.func @transform_4(%arg0: i32, %arg1: i32) -> (i32, i32) {
    %c0_i32 = arith.constant 0 : i32
    %c0_i32_0 = arith.constant 0 : i32
    return %arg0, %c0_i32 : i32, i32
  }
}

</mosaic_0001>

<llo_original>
// kernel: tpu_custom_call.1
$region0: #{tpu_custom_call.1}
  #allocation0 [shape = 'u32[]', space=smem, size = 0x4, offset = 0x4, fixed_abs, tag = 'smem constant byte address 0x4 - core index']
  #allocation1 [shape = 'u32[144,128]{1,0:T(1,128)}', space=vmem, size = 0x12000, scoped, tag = 'internal scratch']
  #allocation2 [shape = 'f32[8,1]{1,0:T(8,128)}', space=vmem, size = 0x1000, scoped, tag = 'scratch operand']
  #allocation3 [shape = 'f32[8,1]{1,0:T(8,128)}', space=vmem, size = 0x1000, scoped, tag = 'scratch operand']
  %s0 = inlined_call_operand.hbm [shape: f32[16,32], index: 0, kind: input, shape index: {}]
  %s1 = inlined_call_operand.hbm [shape: f32[32,128], index: 1, kind: input, shape index: {}]
  %s2 = inlined_call_operand.vmem [shape: f32[1,128], index: 2, kind: input, shape index: {}]
  %s3 = inlined_call_operand.hbm [shape: f32[16,128], index: 3, kind: output, shape index: {0}]
  %s4 = inlined_call_operand.vmem [shape: f32[16,1], index: 4, kind: output, shape index: {1}]
  %5 = xla_tuple %s3, %s4
  %s6 = sld [smem:[#allocation0]]
  $region69: #{tpu_custom_call.1} parent=0
    _
  %s8 = ssub.s32 1, %s6
  %s9 = scalar_select 0, %s8, %s6
  $region1: #{tpu_custom_call.1} parent=0
    #allocation4 [shape = 'u8[8192]{0}', space=vmem, size = 0x2000, scoped, tag = 'input window, operand 0']
    #allocation5 [shape = 's32[2]{0}', space=sflag, size = 0x8, scoped, tag = 'scoped memory for tpu_custom_call.1']
    #allocation6 [shape = 's32[2]{0}', space=sflag, size = 0x8, scoped, tag = 'scoped memory for tpu_custom_call.1']
    #allocation7 [shape = 'u8[16384]{0}', space=vmem, size = 0x4000, scoped, tag = 'input window, operand 1, single buffered']
    #allocation8 [shape = 's32[1]{0}', space=sflag, size = 0x4, scoped, tag = 'scoped memory for tpu_custom_call.1']
    #allocation9 [shape = 'u8[8192]{0}', space=vmem, size = 0x2000, scoped, tag = 'output window, operand 0']
    %10 = vsyncpa [#allocation5], 0
    %s11 = scalar_lea.sflag [#allocation5], 1
    %12 = vsyncpa %s11, 0
    %13 = vsyncpa [#allocation8], 0
    %14 = vsyncpa [#allocation6], 0
    %s15 = scalar_lea.sflag [#allocation6], 1
    %16 = vsyncpa %s15, 0
    loop: start=0, step=1, limit=4
    $region2: #{tpu_custom_call.1} parent=1 // loop_pre_header
      _
    $region3: #{tpu_custom_call.1} parent=1 // loop_header
      %s18 = sphi 0, %s22
      %p19 = scmp.ge.s32.totalorder %s18, 4
      %s25 = sphi 0, %s37
      %s26 = sphi 0, %s33
      %s27 = sphi 0, %s25
      %s28 = sphi 0, %s26
      %s29 = sphi 0, %s27
      %s30 = sphi 0, %s28
      %s40 = sphi 0, %s42
      %s43 = sphi 0, %s40
      %s44 = sphi 0, %s43
      %s60 = sphi 0, %s44
      %s66 = sphi 0, %s68
      %s69 = sphi 0, %s66
      %s70 = sphi 0, %s69
      %s86 = sphi 0, %s70
      %s90 = sphi 0, %s90
      %s92 = sphi 0, %s90
      %s93 = sphi 0, %s92
      %s107 = sphi 0, %s93
      %s115 = sphi 0, %s117
      %s118 = sphi 0, %s115
      %s119 = sphi 0, %s118
      %s135 = sphi 0, %s119
      %s141 = sphi 0, %s143
      %s144 = sphi 0, %s141
      %s145 = sphi 0, %s144
      %s161 = sphi 0, %s145
    $region4: #{tpu_custom_call.1} parent=1 // loop_header_branch
      %21 = sbr.rel (%p19) target = $region8
    $region5: #{tpu_custom_call.1} parent=1 // loop_body
      %s23 = ssub.s32 %s18, 1
      %s24 = ssub.s32 %s18, 2
      %s31 = sadd.s32 1, %s26
      %p32 = scmp.ge.s32.totalorder %s31, 1
      %s33 = scalar_select %p32, 0, %s31
      %s34 = sadd.s32 1, %s25
      %s35 = scalar_select %p32, %s34, %s25
      %p36 = scmp.ge.s32.totalorder %s35, 2
      %s37 = scalar_select %p36, 0, %s35
      %s38 = ssub.s32 %s25, %s37
      %p39 = scmp.eq.s32.totalorder %s38, 0
      %s41 = sadd.s32 %s40, 1
      %s42 = scalar_select %p39, %s40, %s41
      %p45 = pneg %p39
      %p46 = scmp.eq.s32.totalorder %s18, 1
      %p47 = por %p45, %p46
      %p48 = scmp.ne.s32.totalorder %s40, %s43
      %p49 = scmp.eq.s32.totalorder %s18, 0
      %p50 = por %p48, %p49
      %p51 = scmp.ne.s32.totalorder %s40, %s43
      %p52 = scmp.eq.s32.totalorder %s23, 1
      %p53 = por %p51, %p52
      %p54 = scmp.ne.s32.totalorder %s43, %s44
      %p55 = scmp.eq.s32.totalorder %s23, 0
      %p56 = por %p54, %p55
      %p57 = scmp.ne.s32.totalorder %s43, %s44
      %p58 = scmp.eq.s32.totalorder %s24, 1
      %p59 = por %p57, %p58
      %p61 = scmp.ne.s32.totalorder %s44, %s60
      %p62 = scmp.eq.s32.totalorder %s24, 0
      %p63 = por %p61, %p62
      %s64 = ssub.s32 %s26, %s33
      %p65 = scmp.eq.s32.totalorder %s64, 0
      %s67 = sadd.s32 %s66, 1
      %s68 = scalar_select %p65, %s66, %s67
      %p71 = pneg %p65
      %p72 = scmp.eq.s32.totalorder %s18, 1
      %p73 = por %p71, %p72
      %p74 = scmp.ne.s32.totalorder %s66, %s69
      %p75 = scmp.eq.s32.totalorder %s18, 0
      %p76 = por %p74, %p75
      %p77 = scmp.ne.s32.totalorder %s66, %s69
      %p78 = scmp.eq.s32.totalorder %s23, 1
      %p79 = por %p77, %p78
      %p80 = scmp.ne.s32.totalorder %s69, %s70
      %p81 = scmp.eq.s32.totalorder %s23, 0
      %p82 = por %p80, %p81
      %p83 = scmp.ne.s32.totalorder %s69, %s70
      %p84 = scmp.eq.s32.totalorder %s24, 1
      %p85 = por %p83, %p84
      %p87 = scmp.ne.s32.totalorder %s70, %s86
      %p88 = scmp.eq.s32.totalorder %s24, 0
      %p89 = por %p87, %p88
      %s91 = sadd.s32 %s90, 1
      %p94 = scmp.eq.s32.totalorder %s18, 1
      %p95 = scmp.ne.s32.totalorder %s90, %s92
      %p96 = scmp.eq.s32.totalorder %s18, 0
      %p97 = por %p95, %p96
      %p98 = scmp.ne.s32.totalorder %s90, %s92
      %p99 = scmp.eq.s32.totalorder %s23, 1
      %p100 = por %p98, %p99
      %p101 = scmp.ne.s32.totalorder %s92, %s93
      %p102 = scmp.eq.s32.totalorder %s23, 0
      %p103 = por %p101, %p102
      %p104 = scmp.ne.s32.totalorder %s92, %s93
      %p105 = scmp.eq.s32.totalorder %s24, 1
      %p106 = por %p104, %p105
      %p108 = scmp.ne.s32.totalorder %s93, %s107
      %p109 = scmp.eq.s32.totalorder %s24, 0
      %p110 = por %p108, %p109
      %s111 = ssub.s32 %s25, %s37
      %s112 = ssub.s32 %s26, %s33
      %s113 = sor.u32 %s111, %s112
      %p114 = scmp.eq.s32.totalorder %s113, 0
      %s116 = sadd.s32 %s115, 1
      %s117 = scalar_select %p114, %s115, %s116
      %p120 = pneg %p114
      %p121 = scmp.eq.s32.totalorder %s18, 1
      %p122 = por %p120, %p121
      %p123 = scmp.ne.s32.totalorder %s115, %s118
      %p124 = scmp.eq.s32.totalorder %s18, 0
      %p125 = por %p123, %p124
      %p126 = scmp.ne.s32.totalorder %s115, %s118
      %p127 = scmp.eq.s32.totalorder %s23, 1
      %p128 = por %p126, %p127
      %p129 = scmp.ne.s32.totalorder %s118, %s119
      %p130 = scmp.eq.s32.totalorder %s23, 0
      %p131 = por %p129, %p130
      %p132 = scmp.ne.s32.totalorder %s118, %s119
      %p133 = scmp.eq.s32.totalorder %s24, 1
      %p134 = por %p132, %p133
      %p136 = scmp.ne.s32.totalorder %s119, %s135
      %p137 = scmp.eq.s32.totalorder %s24, 0
      %p138 = por %p136, %p137
      %s139 = ssub.s32 %s25, %s37
      %p140 = scmp.eq.s32.totalorder %s139, 0
      %s142 = sadd.s32 %s141, 1
      %s143 = scalar_select %p140, %s141, %s142
      %p146 = pneg %p140
      %p147 = scmp.eq.s32.totalorder %s18, 1
      %p148 = por %p146, %p147
      %p149 = scmp.ne.s32.totalorder %s141, %s144
      %p150 = scmp.eq.s32.totalorder %s18, 0
      %p151 = por %p149, %p150
      %p152 = scmp.ne.s32.totalorder %s141, %s144
      %p153 = scmp.eq.s32.totalorder %s23, 1
      %p154 = por %p152, %p153
      %p155 = scmp.ne.s32.totalorder %s144, %s145
      %p156 = scmp.eq.s32.totalorder %s23, 0
      %p157 = por %p155, %p156
      %p158 = scmp.ne.s32.totalorder %s144, %s145
      %p159 = scmp.eq.s32.totalorder %s24, 1
      %p160 = por %p158, %p159
      %p162 = scmp.ne.s32.totalorder %s145, %s161
      %p163 = scmp.eq.s32.totalorder %s24, 0
      %p164 = por %p162, %p163
      %p165 = scmp.le.s32.totalorder 1, %s18
      %p166 = scmp.lt.s32.totalorder %s18, 3
      %p167 = pnand %p165, %p166
      %p168 = pneg %p167
      // Predicated region
      $region9: #{tpu_custom_call.1} parent=5 // pred_check
        _
      $region10: #{tpu_custom_call.1} parent=5 // pred_check_branch
        %170 = sbr.rel (%p167) target = $region12
      $region11: #{tpu_custom_call.1} parent=5 // pred_region
        %s171 = ssub.s32 %s18, 1
        // Predicated region
        $region13: #{tpu_custom_call.1} parent=11 // pred_check
          %p172 = pneg %p82
        $region14: #{tpu_custom_call.1} parent=11 // pred_check_branch
          %174 = sbr.rel (%p172) target = $region16
        $region15: #{tpu_custom_call.1} parent=11 // pred_region
          %s176 = ssub.s32 512, 512
          %177 = vsyncadd [#allocation8], %s176
          %s178 = smul.addr %s28, 128
          %s179 = scalar_lea.hbm %s1, %s178
          %s180 = sshll.u32 [#allocation7], 4
          %s181 = int_to_ptr.vmem [resolvable:$true] %s180
          %186 = dma.hbm_to_vmem [thread:$0]  %s179, 512, %s181, [#allocation8], 128, 128, 8
        $region16: #{tpu_custom_call.1} parent=11 // pred_fallthru
          _
        // Predicated region
        $region17: #{tpu_custom_call.1} parent=11 // pred_check
          %p187 = pneg %p103
        $region18: #{tpu_custom_call.1} parent=11 // pred_check_branch
          %189 = sbr.rel (%p187) target = $region20
        $region19: #{tpu_custom_call.1} parent=11 // pred_region
          _
        $region20: #{tpu_custom_call.1} parent=11 // pred_fallthru
          _
      $region12: #{tpu_custom_call.1} parent=5 // pred_fallthru
        _
      %p190 = scmp.lt.s32.totalorder %s18, 2
      // Predicated region
      $region21: #{tpu_custom_call.1} parent=5 // pred_check
        %p191 = pneg %p190
      $region22: #{tpu_custom_call.1} parent=5 // pred_check_branch
        %193 = sbr.rel (%p191) target = $region24
      $region23: #{tpu_custom_call.1} parent=5 // pred_region
        // Predicated region
        $region25: #{tpu_custom_call.1} parent=23 // pred_check
          %p194 = pneg %p50
        $region26: #{tpu_custom_call.1} parent=23 // pred_check_branch
          %196 = sbr.rel (%p194) target = $region28
        $region27: #{tpu_custom_call.1} parent=23 // pred_region
          %s197 = sand.u32 %s40, 1
          %s198 = scalar_lea.sflag [#allocation5], %s197
          %s199 = sand.u32 %s40, 1
          %s200 = smul.addr %s199, 8
          %s201 = scalar_lea.vmem [#allocation4], %s200
          %s203 = ssub.s32 128, 128
          %204 = vsyncadd %s198, %s203
          %s205 = smul.addr %s25, 128
          %s206 = scalar_lea.hbm %s0, %s205
          %s208 = sshll.u32 %s201, 4
          %s209 = int_to_ptr.vmem [resolvable:$true] %s208
          %211 = dma.hbm_to_vmem [thread:$0]  %s206, 128, %s209, %s198
        $region28: #{tpu_custom_call.1} parent=23 // pred_fallthru
          _
      $region24: #{tpu_custom_call.1} parent=5 // pred_fallthru
        _
      %p212 = scmp.le.s32.totalorder 1, %s18
      %p213 = scmp.lt.s32.totalorder %s18, 3
      %p214 = pnand %p212, %p213
      %p215 = pneg %p214
      // Predicated region
      $region29: #{tpu_custom_call.1} parent=5 // pred_check
        _
      $region30: #{tpu_custom_call.1} parent=5 // pred_check_branch
        %217 = sbr.rel (%p214) target = $region32
      $region31: #{tpu_custom_call.1} parent=5 // pred_region
        %s218 = ssub.s32 %s18, 1
        %s219 = sand.u32 %s43, 1
        %s220 = scalar_lea.sflag [#allocation5], %s219
        %s221 = sand.u32 %s43, 1
        %s222 = smul.addr %s221, 8
        %s223 = scalar_lea.vmem [#allocation4], %s222
        // Predicated region
        $region33: #{tpu_custom_call.1} parent=31 // pred_check
          %p224 = pneg %p56
        $region34: #{tpu_custom_call.1} parent=31 // pred_check_branch
          %226 = sbr.rel (%p224) target = $region36
        $region35: #{tpu_custom_call.1} parent=31 // pred_region
          %227 = dma.done %s220, 128
        $region36: #{tpu_custom_call.1} parent=31 // pred_fallthru
          _
        // Predicated region
        $region37: #{tpu_custom_call.1} parent=31 // pred_check
          %p228 = pneg %p82
        $region38: #{tpu_custom_call.1} parent=31 // pred_check_branch
          %230 = sbr.rel (%p228) target = $region40
        $region39: #{tpu_custom_call.1} parent=31 // pred_region
          %231 = dma.done [#allocation8], 512
        $region40: #{tpu_custom_call.1} parent=31 // pred_fallthru
          _
        %s232 = sand.u32 %s43, 1
        %s233 = scalar_lea.sflag [#allocation5], %s232
        %s234 = sand.u32 %s43, 1
        %s235 = smul.addr %s234, 8
        %s236 = scalar_lea.vmem [#allocation4], %s235
        %p237 = pneg %p56
        %p238 = pneg %p53
        %p239 = pneg %p82
        %p240 = pneg %p79
        %p241 = pneg %p103
        %p242 = pneg %p100
        %p243 = pneg %p131
        %p244 = pneg %p128
        %s245 = sand.u32 %s118, 1
        %s246 = scalar_lea.sflag [#allocation6], %s245
        %s247 = sand.u32 %s118, 1
        %s248 = smul.addr %s247, 8
        %s249 = scalar_lea.vmem [#allocation9], %s248
        %p250 = pneg %p157
        %p251 = pneg %p154
        %p252 = scmp.lt.s32.totalorder %s27, 1
        %s253 = scalar_select %p252, %s27, 1
        %s254 = smul.addr %s253, 8
        %s255 = scalar_lea.vmem %s4, %s254
        %p256 = scmp.lt.s32.totalorder %s27, 1
        %s257 = scalar_select %p256, %s27, 1
        %s258 = smul.addr %s257, 8
        %s259 = scalar_lea.vmem %s4, %s258
        %p260 = scmp.eq.s32.totalorder %s28, 0
        // Predicated region
        $region41: #{tpu_custom_call.1} parent=31 // pred_check
          %p261 = pneg %p260
        $region42: #{tpu_custom_call.1} parent=31 // pred_check_branch
          %263 = sbr.rel (%p261) target = $region44
        $region43: #{tpu_custom_call.1} parent=31 // pred_region
          %vm264 = vcmask 7168
          %265 = vst.msk [vmem:[#allocation2] sm:$0xff] %vm264, -inf
          %266 = vst.msk [vmem:[#allocation3] sm:$0xff] %vm264, 0.0
        $region44: #{tpu_custom_call.1} parent=31 // pred_fallthru
          _
        %v267 = vld [vmem:[%s223] sm:$0xff]
        %v268 = vld [vmem:[#allocation7] sm:$0xff]
        %v269 = vld [vmem:[#allocation7 + $0x8] sm:$0xff]
        %v270 = vld [vmem:[#allocation7 + $0x10] sm:$0xff]
        %v271 = vld [vmem:[#allocation7 + $0x18] sm:$0xff]
        %s272 = smul.u32 %s28, 128
        %s273 = sshra.s32 %s272, 7
        %s274 = sand.u32 %s272, 127
        %s275 = scalar_lea.vmem %s2, %s273
        %v276 = vld [vmem:[%s275] sm:$0x1]
        %v278 = vlaneseq
        %v279 = vshrl.u32 %v278, 7
        %v280 = vsub.s32 0, %v279
        %v281 = vrot.slane %v276, %v280
        %vm283 = vcmask 261120
        %v285 = vsel %vm283, %v267, 0
        %287 = vmatprep.subr.mxu0 0.0
        %288 = vmatpush1.msra.mxu0 0.0
        %289 = vmatprep.subr.mxu0 0.0
        %290 = vmatpush1.msra.mxu0 0.0
        %291 = vmatprep.subr.mxu0 0.0
        %292 = vmatpush1.msra.mxu0 0.0
        %293 = vmatprep.subr.mxu0 0.0
        %294 = vmatpush1.msra.mxu0 0.0
        %295 = vmatprep.subr.mxu0 0.0
        %296 = vmatpush1.msra.mxu0 0.0
        %297 = vmatprep.subr.mxu0 0.0
        %298 = vmatpush1.msra.mxu0 0.0
        %299 = vmatprep.subr.mxu0 0.0
        %300 = vmatpush1.msra.mxu0 0.0
        %301 = vmatprep.subr.mxu0 0.0
        %302 = vmatpush1.msra.mxu0 0.0
        %303 = vmatprep.subr.mxu0 0.0
        %304 = vmatpush1.msra.mxu0 0.0
        %305 = vmatprep.subr.mxu0 0.0
        %306 = vmatpush1.msra.mxu0 0.0
        %307 = vmatprep.subr.mxu0 0.0
        %308 = vmatpush1.msra.mxu0 0.0
        %309 = vmatprep.subr.mxu0 0.0
        %310 = vmatpush1.msra.mxu0 0.0
        %311 = vmatprep.subr.mxu0 0.0
        %312 = vmatpush1.msra.mxu0 %v271
        %313 = vmatprep.subr.mxu0 0.0
        %314 = vmatpush1.msra.mxu0 %v270
        %315 = vmatprep.subr.mxu0 0.0
        %316 = vmatpush1.msra.mxu0 %v269
        %317 = vmatprep.subr.mxu0 0.0
        %318 = vmatpush1.msra.mxu0 %v268
        %319 = vmatprep.subr.mxu0 0.0
        %320 = vmatpush2.msra.mxu0 0.0
        %321 = vmatprep.subr.mxu0 0.0
        %322 = vmatpush2.msra.mxu0 0.0
        %323 = vmatprep.subr.mxu0 0.0
        %324 = vmatpush2.msra.mxu0 0.0
        %325 = vmatprep.subr.mxu0 0.0
        %326 = vmatpush2.msra.mxu0 0.0
        %327 = vmatprep.subr.mxu0 0.0
        %328 = vmatpush2.msra.mxu0 0.0
        %329 = vmatprep.subr.mxu0 0.0
        %330 = vmatpush2.msra.mxu0 0.0
        %331 = vmatprep.subr.mxu0 0.0
        %332 = vmatpush2.msra.mxu0 0.0
        %333 = vmatprep.subr.mxu0 0.0
        %334 = vmatpush2.msra.mxu0 0.0
        %335 = vmatprep.subr.mxu0 0.0
        %336 = vmatpush2.msra.mxu0 0.0
        %337 = vmatprep.subr.mxu0 0.0
        %338 = vmatpush2.msra.mxu0 0.0
        %339 = vmatprep.subr.mxu0 0.0
        %340 = vmatpush2.msra.mxu0 0.0
        %341 = vmatprep.subr.mxu0 0.0
        %342 = vmatpush2.msra.mxu0 0.0
        %343 = vmatprep.subr.mxu0 0.0
        %344 = vmatpush2.msra.mxu0 0.0
        %345 = vmatprep.subr.mxu0 0.0
        %346 = vmatpush2.msra.mxu0 0.0
        %347 = vmatprep.subr.mxu0 0.0
        %348 = vmatpush2.msra.mxu0 0.0
        %349 = vmatprep.subr.mxu0 0.0
        %350 = vmatpush2.msra.mxu0 0.0
        %351 = vmatprep.mubr.f32.mxu0 0.0
        %352 = vmatmul.mubr.f32.gmra.mxu0 %v285
        %v353 = vpop.f32.mrf.mxu0
        %v354 = vadd.f32 %v281, %v353
        %v355 = vpop.f32.mrf.mxu0
        %356 = vdwg.mxu0
        %v357 = vld [vmem:[#allocation2] sm:$0xff]
        %358 = vmax.xlane.f32.xlu0 %v354
        %v359 = vpop.xlane.xlu0 %358
        %v360 = vmax.f32 %v357, %v359
        %v361 = vld [vmem:[#allocation3] sm:$0xff]
        %v362 = vsub.f32 %v357, %v360
        %v363 = vmul.f32 %v362, 1.442695
        %v364 = vpow.pop %v363
        %v365 = vmul.f32 %v361, %v364
        %367 = vset.pattern.permute.xlu0 0
        %368 = vperm.xlu0 %367, %v360
        %v369 = vpop.permute.xlu0 %368
        %v371 = vsub.f32 %v354, %v369
        %v372 = vmul.f32 %v371, 1.442695
        %v373 = vpow.pop %v372
        %374 = vadd.xlane.f32.xlu0 %v373
        %v375 = vpop.xlane.xlu0 %374
        %v376 = vadd.f32 %v365, %v375
        %vm377 = vcmask 7168
        %378 = vst.msk [vmem:[#allocation3] sm:$0xff] %vm377, %v376
        %379 = vst.msk [vmem:[#allocation2] sm:$0xff] %vm377, %v360
        %380 = vst [vmem:[%s249] sm:$0xff] %v354
        // Predicated region
        $region45: #{tpu_custom_call.1} parent=31 // pred_check
          %p381 = pneg %p260
        $region46: #{tpu_custom_call.1} parent=31 // pred_check_branch
          %383 = sbr.rel (%p381) target = $region48
        $region47: #{tpu_custom_call.1} parent=31 // pred_region
          %v384 = vld [vmem:[#allocation2] sm:$0xff]
          %v385 = vld [vmem:[#allocation3] sm:$0xff]
          %v386 = vlog2.pop %v385
          %v387 = vmul.f32 %v386, 0.6931472
          %v388 = vadd.f32 %v384, %v387
          %389 = vst.msk [vmem:[%s259] sm:$0xff] %vm377, %v388
        $region48: #{tpu_custom_call.1} parent=31 // pred_fallthru
          _
        %s390 = sand.u32 %s118, 1
        %s391 = scalar_lea.sflag [#allocation6], %s390
        %s392 = sand.u32 %s118, 1
        %s393 = smul.addr %s392, 8
        %s394 = scalar_lea.vmem [#allocation9], %s393
        %p395 = scmp.lt.s32.totalorder %s27, 1
        %s396 = scalar_select %p395, %s27, 1
        %s397 = smul.addr %s396, 8
        %s398 = scalar_lea.vmem %s4, %s397
        // Predicated region
        $region49: #{tpu_custom_call.1} parent=31 // pred_check
          %p399 = pneg %p128
        $region50: #{tpu_custom_call.1} parent=31 // pred_check_branch
          %401 = sbr.rel (%p399) target = $region52
        $region51: #{tpu_custom_call.1} parent=31 // pred_region
          %s403 = ssub.s32 128, 128
          %404 = vsyncadd %s391, %s403
          %s405 = sadd.s32 %s28, %s27
          %s406 = smul.addr %s405, 128
          %s407 = scalar_lea.hbm %s3, %s406
          %s409 = sshll.u32 %s394, 4
          %s410 = int_to_ptr.vmem [resolvable:$true] %s409
          %412 = dma.vmem_to_hbm [thread:$0]  %s410, 128, %s407, %s391
        $region52: #{tpu_custom_call.1} parent=31 // pred_fallthru
          _
        // Predicated region
        $region53: #{tpu_custom_call.1} parent=31 // pred_check
          %p413 = pneg %p154
        $region54: #{tpu_custom_call.1} parent=31 // pred_check_branch
          %415 = sbr.rel (%p413) target = $region56
        $region55: #{tpu_custom_call.1} parent=31 // pred_region
          _
        $region56: #{tpu_custom_call.1} parent=31 // pred_fallthru
          _
      $region32: #{tpu_custom_call.1} parent=5 // pred_fallthru
        _
      %p416 = scmp.le.s32.totalorder 2, %s18
      // Predicated region
      $region57: #{tpu_custom_call.1} parent=5 // pred_check
        %p417 = pneg %p416
      $region58: #{tpu_custom_call.1} parent=5 // pred_check_branch
        %419 = sbr.rel (%p417) target = $region60
      $region59: #{tpu_custom_call.1} parent=5 // pred_region
        %s420 = ssub.s32 %s18, 2
        // Predicated region
        $region61: #{tpu_custom_call.1} parent=59 // pred_check
          %p421 = pneg %p134
        $region62: #{tpu_custom_call.1} parent=59 // pred_check_branch
          %423 = sbr.rel (%p421) target = $region64
        $region63: #{tpu_custom_call.1} parent=59 // pred_region
          %s424 = sand.u32 %s119, 1
          %s425 = scalar_lea.sflag [#allocation6], %s424
          %s426 = sand.u32 %s119, 1
          %s427 = smul.addr %s426, 8
          %s428 = scalar_lea.vmem [#allocation9], %s427
          %429 = dma.done %s425, 128
        $region64: #{tpu_custom_call.1} parent=59 // pred_fallthru
          _
        // Predicated region
        $region65: #{tpu_custom_call.1} parent=59 // pred_check
          %p430 = pneg %p160
        $region66: #{tpu_custom_call.1} parent=59 // pred_check_branch
          %432 = sbr.rel (%p430) target = $region68
        $region67: #{tpu_custom_call.1} parent=59 // pred_region
          %p433 = scmp.lt.s32.totalorder %s29, 1
          %s434 = scalar_select %p433, %s29, 1
          %s435 = smul.addr %s434, 8
          %s436 = scalar_lea.vmem %s4, %s435
        $region68: #{tpu_custom_call.1} parent=59 // pred_fallthru
          _
      $region60: #{tpu_custom_call.1} parent=5 // pred_fallthru
        _
    $region6: #{tpu_custom_call.1} parent=1 // loop_footer
      %s22 = sadd.s32 1, %s18
    $region7: #{tpu_custom_call.1} parent=1 // loop_footer_branch
      %17 = sbr.rel target = $region3
    $region8: #{tpu_custom_call.1} parent=1 // loop_exit
      _
    %437 = vsyncpa [#allocation5], 1
    %s438 = scalar_lea.sflag [#allocation5], 1
    %439 = vsyncpa %s438, 1
    %440 = vsyncpa [#allocation8], 1
    %441 = vsyncpa [#allocation6], 1
    %s442 = scalar_lea.sflag [#allocation6], 1
    %443 = vsyncpa %s442, 1

</llo_original>
